<compile_context>
chip_gen: v6e
topology: v6e:2x2x1
jax: 0.10.0
libtpu: 0.0.40
codegen_flags: <defaults>
</compile_context>

<pallas_src>
import functools

import numpy as np
import jax
import jax.numpy as jnp
from jax import lax
from jax.experimental import pallas as pl
from jax.experimental.pallas import tpu as pltpu


CONV_IN_C = 1
CONV_OUT_C = 128
CONV_K = 3
LIN_IN = 256
LIN_OUT = 64          # assumed (see TODO above)


# ---------------------------------------------------------------------------
# Fused Pallas kernel: conv matmul -> view(-1, 256) relayout -> linear matmul
# One grid step == one image of the batch.
# ---------------------------------------------------------------------------
def _fused_forward_kernel(CG, RP, P, patches_ref, wc_ref, wl_ref, b_ref,
                          out_ref, flat_ref):
    # Conv as matmul on the MXU: (C, KP) @ (KP, P) -> (C, P).  wc rows are
    # channel-permuted so the relayout below uses contiguous 8-row blocks.
    conv = jnp.dot(wc_ref[...], patches_ref[0],
                   preferred_element_type=jnp.float32)

    # Materialize this image's rows of the PyTorch `view(-1, 256)` tensor in
    # VMEM: flat[r, cg*P + p] == conv_nchw[r*CG + cg, p].
    for cg in range(CG):
        flat_ref[:, cg * P:(cg + 1) * P] = conv[cg * RP:(cg + 1) * RP, :]

    # Linear layer (conv bias pre-folded into b_ref; output lane-dense 128).
    acc = jnp.dot(flat_ref[...], wl_ref[...],
                  preferred_element_type=jnp.float32)
    out_ref[...] = (acc + b_ref[...]).astype(out_ref.dtype)


# ---------------------------------------------------------------------------
# Parameters & one-time parameter transforms
# ---------------------------------------------------------------------------
def init_params():
    k0, k1, k2, k3 = jax.random.split(jax.random.PRNGKey(42), 4)
    fan_in_conv = CONV_IN_C * CONV_K * CONV_K
    conv_w = jax.random.normal(
        k0, (CONV_OUT_C, CONV_IN_C, CONV_K, CONV_K), jnp.float32
    ) * (1.0 / np.sqrt(fan_in_conv))
    conv_b = jax.random.normal(k1, (CONV_OUT_C,), jnp.float32) * 0.01
    lin_w = jax.random.normal(k2, (LIN_OUT, LIN_IN), jnp.float32) * (
        1.0 / np.sqrt(LIN_IN))
    lin_b = jax.random.normal(k3, (LIN_OUT,), jnp.float32) * 0.01
    return conv_w, conv_b, lin_w, lin_b


def prepare_params(conv_w, conv_b, lin_w, lin_b, H, W):
    """One-time weight transforms (no per-call weight work)."""
    C, cin, KH, KW = conv_w.shape
    assert cin == 1, "kernel assumes Conv2d(in_channels=1, ...)"
    OH, OW = H - KH + 1, W - KW + 1
    P = OH * OW                      # spatial positions per image
    lin_out, lin_in = lin_w.shape
    assert lin_in % P == 0 and (C * P) % lin_in == 0, (
        "fused path needs OH*OW | lin_in (see TODO at top)")
    CG = lin_in // P                 # channels per flattened row
    RP = (C * P) // lin_in           # flattened rows per image
    assert CG * RP == C

    K = cin * KH * KW                # 9
    KP = -(-K // 8) * 8              # pad contraction dim 9 -> 16
    NOP = -(-lin_out // 128) * 128   # pad output features 64 -> 128 (lane-dense)

    # Conv weight -> im2col matrix, zero-padded K, channel-permuted rows so
    # permuted row cg*RP + r holds original channel r*CG + cg.
    w2d = jnp.pad(conv_w.reshape(C, K), ((0, 0), (0, KP - K)))
    cperm = (np.arange(C) % RP) * CG + (np.arange(C) // RP)
    wc = w2d[cperm]                                         # (C, KP)

    # Linear weight: transpose + zero-pad to lane-dense output width.
    wl = jnp.zeros((lin_in, NOP), jnp.float32).at[:, :lin_out].set(lin_w.T)

    # Fold the conv bias into the linear bias (same tile for every image):
    #   bias[r, o] = lin_b[o] + sum_k conv_b[r*CG + k//P] * wl[k, o]
    cb = jnp.repeat(conv_b, P).reshape(RP, lin_in)
    bl = jnp.zeros((NOP,), jnp.float32).at[:lin_out].set(lin_b)
    bias = cb @ wl + bl[None, :]                            # (RP, NOP)

    # Patch-gather index (KP, P): tap t = di*KW + dj at output position p
    # reads flattened pixel (oh+di)*W + (ow+dj).  Padded taps read pixel 0 and
    # multiply zero weight columns, so they contribute nothing.
    idx = np.zeros((KP, P), dtype=np.int32)
    for t in range(K):
        di, dj = divmod(t, KW)
        for p in range(P):
            oh, ow = divmod(p, OW)
            idx[t, p] = (oh + di) * W + (ow + dj)

    dims = dict(C=C, P=P, CG=CG, RP=RP, KP=KP, NOP=NOP, H=H, W=W,
                lin_in=lin_in, lin_out=lin_out)
    return dict(wc=wc, wl=wl, bias=bias, idx=idx, dims=dims)


# ---------------------------------------------------------------------------
# Forward
# ---------------------------------------------------------------------------
def build_forward(prep):
    wc, wl, bias, idx = prep["wc"], prep["wl"], prep["bias"], prep["idx"]
    d = prep["dims"]
    C, P, CG, RP, KP = d["C"], d["P"], d["CG"], d["RP"], d["KP"]
    NOP, H, W = d["NOP"], d["H"], d["W"]
    lin_in, lin_out = d["lin_in"], d["lin_out"]

    kernel = functools.partial(_fused_forward_kernel, CG, RP, P)

    @jax.jit
    def forward(x):
        N = x.shape[0]
        # Single-gather im2col (no Python-loop slicing / stacked tiny XLA ops).
        patches = x.reshape(N, H * W)[:, idx]               # (N, KP, P)

        out_pad = pl.pallas_call(
            kernel,
            out_shape=jax.ShapeDtypeStruct((N * RP, NOP), jnp.float32),
            grid=(N,),
            in_specs=[
                pl.BlockSpec((1, KP, P), lambda i: (i, 0, 0)),   # patches
                pl.BlockSpec((C, KP), lambda i: (0, 0)),         # conv weight
                pl.BlockSpec((lin_in, NOP), lambda i: (0, 0)),   # linear weight
                pl.BlockSpec((RP, NOP), lambda i: (0, 0)),       # fused bias
            ],
            out_specs=pl.BlockSpec((RP, NOP), lambda i: (i, 0)),
            scratch_shapes=[pltpu.VMEM((RP, lin_in), jnp.float32)],
            compiler_params=pltpu.CompilerParams(
                dimension_semantics=("parallel",)),
        )(patches, wc, wl, bias)

        return out_pad[:, :lin_out]                          # un-pad 128 -> 64

    return forward


if __name__ == "__main__":
    # Input (2, 1, 6, 6): conv -> (2, 128, 4, 4) -> view(-1, 256) -> (16, 256)
    # -> linear -> (16, 64).  OH*OW = 16 divides 256 (needed by fused relayout).
    H = W = 6
    x = jax.random.normal(jax.random.PRNGKey(0), (2, CONV_IN_C, H, W),
                          jnp.float32)
    conv_w, conv_b, lin_w, lin_b = init_params()

    prep = prepare_params(conv_w, conv_b, lin_w, lin_b, H, W)
    forward = build_forward(prep)

    out = jax.block_until_ready(forward(x))

    # Pure-JAX reference (PyTorch semantics).
    ref_conv = lax.conv_general_dilated(
        x, conv_w, window_strides=(1, 1), padding="VALID",
        dimension_numbers=("NCHW", "OIHW", "NCHW"),
    ) + conv_b[None, :, None, None]
    ref = ref_conv.reshape(-1, LIN_IN) @ lin_w.T + lin_b[None, :]

    assert out.shape == ref.shape == (16, LIN_OUT), (out.shape, ref.shape)
    assert jnp.allclose(out, ref, atol=1e-4, rtol=1e-4), "mismatch vs reference"

    print("KERNEL_OK")
</pallas_src>

<mosaic_0001>
module attributes {stable_mosaic.version = 11 : i64} {
  func.func @_fused_forward_kernel(%arg0: i32, %arg1: memref<1x16x16xf32, #tpu.memory_space<vmem>>, %arg2: memref<128x16xf32, #tpu.memory_space<vmem>>, %arg3: memref<256x128xf32, #tpu.memory_space<vmem>>, %arg4: memref<8x128xf32, #tpu.memory_space<vmem>>, %arg5: memref<8x128xf32, #tpu.memory_space<vmem>>, %arg6: memref<8x256xf32, #tpu.memory_space<vmem>>) attributes {dimension_semantics = [#tpu.dimension_semantics<parallel>], iteration_bounds = array<i64: 2>, scalar_prefetch = 0 : i64, scratch_operands = 1 : i64, tpu.core_type = #tpu.core_type<tc>, window_params = [{transform_indices = @transform_0, window_bounds = array<i64: 1, 16, 16>}, {pipeline_mode = #tpu.pipeline_mode<synchronous>, transform_indices = @transform_1, window_bounds = array<i64: 128, 16>}, {pipeline_mode = #tpu.pipeline_mode<synchronous>, transform_indices = @transform_2, window_bounds = array<i64: 256, 128>}, {pipeline_mode = #tpu.pipeline_mode<synchronous>, transform_indices = @transform_3, window_bounds = array<i64: 8, 128>}, {transform_indices = @transform_4, window_bounds = array<i64: 8, 128>}]} {
    %c0 = arith.constant 0 : index
    %c0_0 = arith.constant 0 : index
    %0 = vector.load %arg2[%c0, %c0_0] : memref<128x16xf32, #tpu.memory_space<vmem>>, vector<128x16xf32>
    %c0_1 = arith.constant 0 : index
    %c0_2 = arith.constant 0 : index
    %c0_3 = arith.constant 0 : index
    %1 = vector.load %arg1[%c0_1, %c0_2, %c0_3] : memref<1x16x16xf32, #tpu.memory_space<vmem>>, vector<1x16x16xf32>
    %2 = vector.shape_cast %1 : vector<1x16x16xf32> to vector<16x16xf32>
    %cst = arith.constant dense<0.000000e+00> : vector<128x16xf32>
    %3 = tpu.matmul %0, %2, %cst {dimension_numbers = #tpu.dot_dimension_numbers<[1], [0], [0], [1], [0, 0, 1, 1], [], []>} : vector<128x16xf32>, vector<16x16xf32>, vector<128x16xf32> -> vector<128x16xf32>
    %4 = vector.extract_strided_slice %3 {offsets = [0, 0], sizes = [8, 16], strides = [1, 1]} : vector<128x16xf32> to vector<8x16xf32>
    %c0_4 = arith.constant 0 : index
    %c0_5 = arith.constant 0 : index
    %5 = vector.load %arg6[%c0_4, %c0_5] : memref<8x256xf32, #tpu.memory_space<vmem>>, vector<8x16xf32>
    tpu.vector_store %arg6[%c0_4, %c0_5], %4 {strides = array<i32>} : memref<8x256xf32, #tpu.memory_space<vmem>>, vector<8x16xf32>,
    %6 = vector.extract_strided_slice %3 {offsets = [8, 0], sizes = [8, 16], strides = [1, 1]} : vector<128x16xf32> to vector<8x16xf32>
    %c0_6 = arith.constant 0 : index
    %c16 = arith.constant 16 : index
    %7 = vector.load %arg6[%c0_6, %c16] : memref<8x256xf32, #tpu.memory_space<vmem>>, vector<8x16xf32>
    tpu.vector_store %arg6[%c0_6, %c16], %6 {strides = array<i32>} : memref<8x256xf32, #tpu.memory_space<vmem>>, vector<8x16xf32>,
    %8 = vector.extract_strided_slice %3 {offsets = [16, 0], sizes = [8, 16], strides = [1, 1]} : vector<128x16xf32> to vector<8x16xf32>
    %c0_7 = arith.constant 0 : index
    %c32 = arith.constant 32 : index
    %9 = vector.load %arg6[%c0_7, %c32] : memref<8x256xf32, #tpu.memory_space<vmem>>, vector<8x16xf32>
    tpu.vector_store %arg6[%c0_7, %c32], %8 {strides = array<i32>} : memref<8x256xf32, #tpu.memory_space<vmem>>, vector<8x16xf32>,
    %10 = vector.extract_strided_slice %3 {offsets = [24, 0], sizes = [8, 16], strides = [1, 1]} : vector<128x16xf32> to vector<8x16xf32>
    %c0_8 = arith.constant 0 : index
    %c48 = arith.constant 48 : index
    %11 = vector.load %arg6[%c0_8, %c48] : memref<8x256xf32, #tpu.memory_space<vmem>>, vector<8x16xf32>
    tpu.vector_store %arg6[%c0_8, %c48], %10 {strides = array<i32>} : memref<8x256xf32, #tpu.memory_space<vmem>>, vector<8x16xf32>,
    %12 = vector.extract_strided_slice %3 {offsets = [32, 0], sizes = [8, 16], strides = [1, 1]} : vector<128x16xf32> to vector<8x16xf32>
    %c0_9 = arith.constant 0 : index
    %c64 = arith.constant 64 : index
    %13 = vector.load %arg6[%c0_9, %c64] : memref<8x256xf32, #tpu.memory_space<vmem>>, vector<8x16xf32>
    tpu.vector_store %arg6[%c0_9, %c64], %12 {strides = array<i32>} : memref<8x256xf32, #tpu.memory_space<vmem>>, vector<8x16xf32>,
    %14 = vector.extract_strided_slice %3 {offsets = [40, 0], sizes = [8, 16], strides = [1, 1]} : vector<128x16xf32> to vector<8x16xf32>
    %c0_10 = arith.constant 0 : index
    %c80 = arith.constant 80 : index
    %15 = vector.load %arg6[%c0_10, %c80] : memref<8x256xf32, #tpu.memory_space<vmem>>, vector<8x16xf32>
    tpu.vector_store %arg6[%c0_10, %c80], %14 {strides = array<i32>} : memref<8x256xf32, #tpu.memory_space<vmem>>, vector<8x16xf32>,
    %16 = vector.extract_strided_slice %3 {offsets = [48, 0], sizes = [8, 16], strides = [1, 1]} : vector<128x16xf32> to vector<8x16xf32>
    %c0_11 = arith.constant 0 : index
    %c96 = arith.constant 96 : index
    %17 = vector.load %arg6[%c0_11, %c96] : memref<8x256xf32, #tpu.memory_space<vmem>>, vector<8x16xf32>
    tpu.vector_store %arg6[%c0_11, %c96], %16 {strides = array<i32>} : memref<8x256xf32, #tpu.memory_space<vmem>>, vector<8x16xf32>,
    %18 = vector.extract_strided_slice %3 {offsets = [56, 0], sizes = [8, 16], strides = [1, 1]} : vector<128x16xf32> to vector<8x16xf32>
    %c0_12 = arith.constant 0 : index
    %c112 = arith.constant 112 : index
    %19 = vector.load %arg6[%c0_12, %c112] : memref<8x256xf32, #tpu.memory_space<vmem>>, vector<8x16xf32>
    tpu.vector_store %arg6[%c0_12, %c112], %18 {strides = array<i32>} : memref<8x256xf32, #tpu.memory_space<vmem>>, vector<8x16xf32>,
    %20 = vector.extract_strided_slice %3 {offsets = [64, 0], sizes = [8, 16], strides = [1, 1]} : vector<128x16xf32> to vector<8x16xf32>
    %c0_13 = arith.constant 0 : index
    %c128 = arith.constant 128 : index
    %21 = vector.load %arg6[%c0_13, %c128] : memref<8x256xf32, #tpu.memory_space<vmem>>, vector<8x16xf32>
    tpu.vector_store %arg6[%c0_13, %c128], %20 {strides = array<i32>} : memref<8x256xf32, #tpu.memory_space<vmem>>, vector<8x16xf32>,
    %22 = vector.extract_strided_slice %3 {offsets = [72, 0], sizes = [8, 16], strides = [1, 1]} : vector<128x16xf32> to vector<8x16xf32>
    %c0_14 = arith.constant 0 : index
    %c144 = arith.constant 144 : index
    %23 = vector.load %arg6[%c0_14, %c144] : memref<8x256xf32, #tpu.memory_space<vmem>>, vector<8x16xf32>
    tpu.vector_store %arg6[%c0_14, %c144], %22 {strides = array<i32>} : memref<8x256xf32, #tpu.memory_space<vmem>>, vector<8x16xf32>,
    %24 = vector.extract_strided_slice %3 {offsets = [80, 0], sizes = [8, 16], strides = [1, 1]} : vector<128x16xf32> to vector<8x16xf32>
    %c0_15 = arith.constant 0 : index
    %c160 = arith.constant 160 : index
    %25 = vector.load %arg6[%c0_15, %c160] : memref<8x256xf32, #tpu.memory_space<vmem>>, vector<8x16xf32>
    tpu.vector_store %arg6[%c0_15, %c160], %24 {strides = array<i32>} : memref<8x256xf32, #tpu.memory_space<vmem>>, vector<8x16xf32>,
    %26 = vector.extract_strided_slice %3 {offsets = [88, 0], sizes = [8, 16], strides = [1, 1]} : vector<128x16xf32> to vector<8x16xf32>
    %c0_16 = arith.constant 0 : index
    %c176 = arith.constant 176 : index
    %27 = vector.load %arg6[%c0_16, %c176] : memref<8x256xf32, #tpu.memory_space<vmem>>, vector<8x16xf32>
    tpu.vector_store %arg6[%c0_16, %c176], %26 {strides = array<i32>} : memref<8x256xf32, #tpu.memory_space<vmem>>, vector<8x16xf32>,
    %28 = vector.extract_strided_slice %3 {offsets = [96, 0], sizes = [8, 16], strides = [1, 1]} : vector<128x16xf32> to vector<8x16xf32>
    %c0_17 = arith.constant 0 : index
    %c192 = arith.constant 192 : index
    %29 = vector.load %arg6[%c0_17, %c192] : memref<8x256xf32, #tpu.memory_space<vmem>>, vector<8x16xf32>
    tpu.vector_store %arg6[%c0_17, %c192], %28 {strides = array<i32>} : memref<8x256xf32, #tpu.memory_space<vmem>>, vector<8x16xf32>,
    %30 = vector.extract_strided_slice %3 {offsets = [104, 0], sizes = [8, 16], strides = [1, 1]} : vector<128x16xf32> to vector<8x16xf32>
    %c0_18 = arith.constant 0 : index
    %c208 = arith.constant 208 : index
    %31 = vector.load %arg6[%c0_18, %c208] : memref<8x256xf32, #tpu.memory_space<vmem>>, vector<8x16xf32>
    tpu.vector_store %arg6[%c0_18, %c208], %30 {strides = array<i32>} : memref<8x256xf32, #tpu.memory_space<vmem>>, vector<8x16xf32>,
    %32 = vector.extract_strided_slice %3 {offsets = [112, 0], sizes = [8, 16], strides = [1, 1]} : vector<128x16xf32> to vector<8x16xf32>
    %c0_19 = arith.constant 0 : index
    %c224 = arith.constant 224 : index
    %33 = vector.load %arg6[%c0_19, %c224] : memref<8x256xf32, #tpu.memory_space<vmem>>, vector<8x16xf32>
    tpu.vector_store %arg6[%c0_19, %c224], %32 {strides = array<i32>} : memref<8x256xf32, #tpu.memory_space<vmem>>, vector<8x16xf32>,
    %34 = vector.extract_strided_slice %3 {offsets = [120, 0], sizes = [8, 16], strides = [1, 1]} : vector<128x16xf32> to vector<8x16xf32>
    %c0_20 = arith.constant 0 : index
    %c240 = arith.constant 240 : index
    %35 = vector.load %arg6[%c0_20, %c240] : memref<8x256xf32, #tpu.memory_space<vmem>>, vector<8x16xf32>
    tpu.vector_store %arg6[%c0_20, %c240], %34 {strides = array<i32>} : memref<8x256xf32, #tpu.memory_space<vmem>>, vector<8x16xf32>,
    %c0_21 = arith.constant 0 : index
    %c0_22 = arith.constant 0 : index
    %36 = vector.load %arg6[%c0_21, %c0_22] : memref<8x256xf32, #tpu.memory_space<vmem>>, vector<8x256xf32>
    %c0_23 = arith.constant 0 : index
    %c0_24 = arith.constant 0 : index
    %37 = vector.load %arg3[%c0_23, %c0_24] : memref<256x128xf32, #tpu.memory_space<vmem>>, vector<256x128xf32>
    %cst_25 = arith.constant dense<0.000000e+00> : vector<8x128xf32>
    %38 = tpu.matmul %36, %37, %cst_25 {dimension_numbers = #tpu.dot_dimension_numbers<[1], [0], [0], [1], [0, 0, 1, 1], [], []>} : vector<8x256xf32>, vector<256x128xf32>, vector<8x128xf32> -> vector<8x128xf32>
    %c0_26 = arith.constant 0 : index
    %c0_27 = arith.constant 0 : index
    %39 = vector.load %arg4[%c0_26, %c0_27] : memref<8x128xf32, #tpu.memory_space<vmem>>, vector<8x128xf32>
    %40 = arith.addf %38, %39 : vector<8x128xf32>
    %c0_28 = arith.constant 0 : index
    %c0_29 = arith.constant 0 : index
    %41 = vector.load %arg5[%c0_28, %c0_29] : memref<8x128xf32, #tpu.memory_space<vmem>>, vector<8x128xf32>
    tpu.vector_store %arg5[%c0_28, %c0_29], %40 {strides = array<i32>} : memref<8x128xf32, #tpu.memory_space<vmem>>, vector<8x128xf32>,
    return
  }
  func.func @transform_0(%arg0: i32) -> (i32, i32, i32) {
    %c0_i32 = arith.constant 0 : i32
    %c0_i32_0 = arith.constant 0 : i32
    %c0_i32_1 = arith.constant 0 : i32
    return %arg0, %c0_i32, %c0_i32_0 : i32, i32, i32
  }
  func.func @transform_1(%arg0: i32) -> (i32, i32) {
    %c0_i32 = arith.constant 0 : i32
    %c0_i32_0 = arith.constant 0 : i32
    %c0_i32_1 = arith.constant 0 : i32
    return %c0_i32, %c0_i32_0 : i32, i32
  }
  func.func @transform_2(%arg0: i32) -> (i32, i32) {
    %c0_i32 = arith.constant 0 : i32
    %c0_i32_0 = arith.constant 0 : i32
    %c0_i32_1 = arith.constant 0 : i32
    return %c0_i32, %c0_i32_0 : i32, i32
  }
  func.func @transform_3(%arg0: i32) -> (i32, i32) {
    %c0_i32 = arith.constant 0 : i32
    %c0_i32_0 = arith.constant 0 : i32
    %c0_i32_1 = arith.constant 0 : i32
    return %c0_i32, %c0_i32_0 : i32, i32
  }
  func.func @transform_4(%arg0: i32) -> (i32, i32) {
    %c0_i32 = arith.constant 0 : i32
    %c0_i32_0 = arith.constant 0 : i32
    return %arg0, %c0_i32 : i32, i32
  }
}

</mosaic_0001>

<llo_original>
// kernel: forward.1
$region0: #{forward.1}
  #allocation0 [shape = 'u32[]', space=smem, size = 0x4, offset = 0x4, fixed_abs, tag = 'smem constant byte address 0x4 - core index']
  #allocation1 [shape = 'u32[144,128]{1,0:T(1,128)}', space=vmem, size = 0x12000, scoped, tag = 'internal scratch']
  #allocation2 [shape = 'f32[8,256]{1,0:T(8,128)}', space=vmem, size = 0x2000, scoped, tag = 'scratch operand']
  %s0 = inlined_call_operand.vmem [shape: f32[2,16,16], index: 0, kind: input, shape index: {}]
  %s1 = inlined_call_operand.vmem [shape: f32[128,16], index: 1, kind: input, shape index: {}]
  %s2 = inlined_call_operand.vmem [shape: f32[256,128], index: 2, kind: input, shape index: {}]
  %s3 = inlined_call_operand.vmem [shape: f32[8,128], index: 3, kind: input, shape index: {}]
  %s4 = inlined_call_operand.hbm [shape: f32[16,128], index: 4, kind: output, shape index: {}]
  %s5 = sld [smem:[#allocation0]]
  $region49: #{forward.1} parent=0
    _
  %s7 = ssub.s32 1, %s5
  %s8 = scalar_select 0, %s7, %s5
  $region1: #{forward.1} parent=0
    #allocation3 [shape = 'u8[8192]{0}', space=vmem, size = 0x2000, scoped, tag = 'output window, operand 0']
    #allocation4 [shape = 's32[2]{0}', space=sflag, size = 0x8, scoped, tag = 'scoped memory for forward.1']
    %9 = vsyncpa [#allocation4], 0
    %s10 = scalar_lea.sflag [#allocation4], 1
    %11 = vsyncpa %s10, 0
    loop: start=0, step=1, limit=4
    $region2: #{forward.1} parent=1 // loop_pre_header
      _
    $region3: #{forward.1} parent=1 // loop_header
      %s13 = sphi 0, %s17
      %p14 = scmp.ge.s32.totalorder %s13, 4
      %s23 = sphi 0, %s25
      %s26 = sphi 0, %s23
      %s27 = sphi 0, %s26
      %s43 = sphi 0, %s27
      %s47 = sphi 0, %s47
      %s49 = sphi 0, %s47
      %s50 = sphi 0, %s49
      %s64 = sphi 0, %s50
      %s68 = sphi 0, %s68
      %s70 = sphi 0, %s68
      %s71 = sphi 0, %s70
      %s85 = sphi 0, %s71
      %s89 = sphi 0, %s89
      %s91 = sphi 0, %s89
      %s92 = sphi 0, %s91
      %s106 = sphi 0, %s92
      %s112 = sphi 0, %s114
      %s115 = sphi 0, %s112
      %s116 = sphi 0, %s115
      %s132 = sphi 0, %s116
    $region4: #{forward.1} parent=1 // loop_header_branch
      %16 = sbr.rel (%p14) target = $region8
    $region5: #{forward.1} parent=1 // loop_body
      %s18 = ssub.s32 %s13, 1
      %s19 = ssub.s32 %s13, 2
      %s20 = sadd.s32 %s13, 1
      %s21 = ssub.s32 %s13, %s20
      %p22 = scmp.eq.s32.totalorder %s21, 0
      %s24 = sadd.s32 %s23, 1
      %s25 = scalar_select %p22, %s23, %s24
      %p28 = pneg %p22
      %p29 = scmp.eq.s32.totalorder %s13, 1
      %p30 = por %p28, %p29
      %p31 = scmp.ne.s32.totalorder %s23, %s26
      %p32 = scmp.eq.s32.totalorder %s13, 0
      %p33 = por %p31, %p32
      %p34 = scmp.ne.s32.totalorder %s23, %s26
      %p35 = scmp.eq.s32.totalorder %s18, 1
      %p36 = por %p34, %p35
      %p37 = scmp.ne.s32.totalorder %s26, %s27
      %p38 = scmp.eq.s32.totalorder %s18, 0
      %p39 = por %p37, %p38
      %p40 = scmp.ne.s32.totalorder %s26, %s27
      %p41 = scmp.eq.s32.totalorder %s19, 1
      %p42 = por %p40, %p41
      %p44 = scmp.ne.s32.totalorder %s27, %s43
      %p45 = scmp.eq.s32.totalorder %s19, 0
      %p46 = por %p44, %p45
      %s48 = sadd.s32 %s47, 1
      %p51 = scmp.eq.s32.totalorder %s13, 1
      %p52 = scmp.ne.s32.totalorder %s47, %s49
      %p53 = scmp.eq.s32.totalorder %s13, 0
      %p54 = por %p52, %p53
      %p55 = scmp.ne.s32.totalorder %s47, %s49
      %p56 = scmp.eq.s32.totalorder %s18, 1
      %p57 = por %p55, %p56
      %p58 = scmp.ne.s32.totalorder %s49, %s50
      %p59 = scmp.eq.s32.totalorder %s18, 0
      %p60 = por %p58, %p59
      %p61 = scmp.ne.s32.totalorder %s49, %s50
      %p62 = scmp.eq.s32.totalorder %s19, 1
      %p63 = por %p61, %p62
      %p65 = scmp.ne.s32.totalorder %s50, %s64
      %p66 = scmp.eq.s32.totalorder %s19, 0
      %p67 = por %p65, %p66
      %s69 = sadd.s32 %s68, 1
      %p72 = scmp.eq.s32.totalorder %s13, 1
      %p73 = scmp.ne.s32.totalorder %s68, %s70
      %p74 = scmp.eq.s32.totalorder %s13, 0
      %p75 = por %p73, %p74
      %p76 = scmp.ne.s32.totalorder %s68, %s70
      %p77 = scmp.eq.s32.totalorder %s18, 1
      %p78 = por %p76, %p77
      %p79 = scmp.ne.s32.totalorder %s70, %s71
      %p80 = scmp.eq.s32.totalorder %s18, 0
      %p81 = por %p79, %p80
      %p82 = scmp.ne.s32.totalorder %s70, %s71
      %p83 = scmp.eq.s32.totalorder %s19, 1
      %p84 = por %p82, %p83
      %p86 = scmp.ne.s32.totalorder %s71, %s85
      %p87 = scmp.eq.s32.totalorder %s19, 0
      %p88 = por %p86, %p87
      %s90 = sadd.s32 %s89, 1
      %p93 = scmp.eq.s32.totalorder %s13, 1
      %p94 = scmp.ne.s32.totalorder %s89, %s91
      %p95 = scmp.eq.s32.totalorder %s13, 0
      %p96 = por %p94, %p95
      %p97 = scmp.ne.s32.totalorder %s89, %s91
      %p98 = scmp.eq.s32.totalorder %s18, 1
      %p99 = por %p97, %p98
      %p100 = scmp.ne.s32.totalorder %s91, %s92
      %p101 = scmp.eq.s32.totalorder %s18, 0
      %p102 = por %p100, %p101
      %p103 = scmp.ne.s32.totalorder %s91, %s92
      %p104 = scmp.eq.s32.totalorder %s19, 1
      %p105 = por %p103, %p104
      %p107 = scmp.ne.s32.totalorder %s92, %s106
      %p108 = scmp.eq.s32.totalorder %s19, 0
      %p109 = por %p107, %p108
      %s110 = ssub.s32 %s13, %s20
      %p111 = scmp.eq.s32.totalorder %s110, 0
      %s113 = sadd.s32 %s112, 1
      %s114 = scalar_select %p111, %s112, %s113
      %p117 = pneg %p111
      %p118 = scmp.eq.s32.totalorder %s13, 1
      %p119 = por %p117, %p118
      %p120 = scmp.ne.s32.totalorder %s112, %s115
      %p121 = scmp.eq.s32.totalorder %s13, 0
      %p122 = por %p120, %p121
      %p123 = scmp.ne.s32.totalorder %s112, %s115
      %p124 = scmp.eq.s32.totalorder %s18, 1
      %p125 = por %p123, %p124
      %p126 = scmp.ne.s32.totalorder %s115, %s116
      %p127 = scmp.eq.s32.totalorder %s18, 0
      %p128 = por %p126, %p127
      %p129 = scmp.ne.s32.totalorder %s115, %s116
      %p130 = scmp.eq.s32.totalorder %s19, 1
      %p131 = por %p129, %p130
      %p133 = scmp.ne.s32.totalorder %s116, %s132
      %p134 = scmp.eq.s32.totalorder %s19, 0
      %p135 = por %p133, %p134
      %p136 = scmp.le.s32.totalorder 1, %s13
      %p137 = scmp.lt.s32.totalorder %s13, 3
      %p138 = pnand %p136, %p137
      %p139 = pneg %p138
      // Predicated region
      $region9: #{forward.1} parent=5 // pred_check
        _
      $region10: #{forward.1} parent=5 // pred_check_branch
        %141 = sbr.rel (%p138) target = $region12
      $region11: #{forward.1} parent=5 // pred_region
        %s142 = ssub.s32 %s13, 1
        // Predicated region
        $region13: #{forward.1} parent=11 // pred_check
          %p143 = pneg %p60
        $region14: #{forward.1} parent=11 // pred_check_branch
          %145 = sbr.rel (%p143) target = $region16
        $region15: #{forward.1} parent=11 // pred_region
          _
        $region16: #{forward.1} parent=11 // pred_fallthru
          _
        // Predicated region
        $region17: #{forward.1} parent=11 // pred_check
          %p146 = pneg %p81
        $region18: #{forward.1} parent=11 // pred_check_branch
          %148 = sbr.rel (%p146) target = $region20
        $region19: #{forward.1} parent=11 // pred_region
          _
        $region20: #{forward.1} parent=11 // pred_fallthru
          _
        // Predicated region
        $region21: #{forward.1} parent=11 // pred_check
          %p149 = pneg %p102
        $region22: #{forward.1} parent=11 // pred_check_branch
          %151 = sbr.rel (%p149) target = $region24
        $region23: #{forward.1} parent=11 // pred_region
          _
        $region24: #{forward.1} parent=11 // pred_fallthru
          _
      $region12: #{forward.1} parent=5 // pred_fallthru
        _
      %p152 = scmp.lt.s32.totalorder %s13, 2
      // Predicated region
      $region25: #{forward.1} parent=5 // pred_check
        %p153 = pneg %p152
      $region26: #{forward.1} parent=5 // pred_check_branch
        %155 = sbr.rel (%p153) target = $region28
      $region27: #{forward.1} parent=5 // pred_region
        // Predicated region
        $region29: #{forward.1} parent=27 // pred_check
          %p156 = pneg %p33
        $region30: #{forward.1} parent=27 // pred_check_branch
          %158 = sbr.rel (%p156) target = $region32
        $region31: #{forward.1} parent=27 // pred_region
          %p159 = scmp.lt.s32.totalorder %s13, 1
          %s160 = scalar_select %p159, %s13, 1
          %s161 = smul.addr %s160, 2
          %s162 = smul.addr %s161, 8
          %s163 = scalar_lea.vmem %s0, %s162
        $region32: #{forward.1} parent=27 // pred_fallthru
          _
      $region28: #{forward.1} parent=5 // pred_fallthru
        _
      %p164 = scmp.le.s32.totalorder 1, %s13
      %p165 = scmp.lt.s32.totalorder %s13, 3
      %p166 = pnand %p164, %p165
      %p167 = pneg %p166
      // Predicated region
      $region33: #{forward.1} parent=5 // pred_check
        _
      $region34: #{forward.1} parent=5 // pred_check_branch
        %169 = sbr.rel (%p166) target = $region36
      $region35: #{forward.1} parent=5 // pred_region
        %s170 = ssub.s32 %s13, 1
        %p171 = scmp.lt.s32.totalorder %s18, 1
        %s172 = scalar_select %p171, %s18, 1
        %s173 = smul.addr %s172, 2
        %s174 = smul.addr %s173, 8
        %s175 = scalar_lea.vmem %s0, %s174
        %p176 = pneg %p39
        %p177 = pneg %p36
        %p178 = pneg %p60
        %p179 = pneg %p57
        %p180 = pneg %p81
        %p181 = pneg %p78
        %p182 = pneg %p102
        %p183 = pneg %p99
        %p184 = pneg %p128
        %p185 = pneg %p125
        %s186 = sand.u32 %s115, 1
        %s187 = scalar_lea.sflag [#allocation4], %s186
        %s188 = sand.u32 %s115, 1
        %s189 = smul.addr %s188, 8
        %s190 = scalar_lea.vmem [#allocation3], %s189
        %p191 = scmp.lt.s32.totalorder %s18, 1
        %s192 = scalar_select %p191, %s18, 1
        %s193 = smul.addr %s192, 2
        %s194 = smul.addr %s193, 8
        %s195 = scalar_lea.vmem %s0, %s194
        %v196 = vld [vmem:[%s1] sm:$0xff]
        %v197 = vld [vmem:[%s1 + $0x8] sm:$0xff]
        %v198 = vld [vmem:[%s1 + $0x10] sm:$0xff]
        %v199 = vld [vmem:[%s1 + $0x18] sm:$0xff]
        %v200 = vld [vmem:[%s1 + $0x20] sm:$0xff]
        %v201 = vld [vmem:[%s1 + $0x28] sm:$0xff]
        %v202 = vld [vmem:[%s1 + $0x30] sm:$0xff]
        %v203 = vld [vmem:[%s1 + $0x38] sm:$0xff]
        %v204 = vld [vmem:[%s1 + $0x40] sm:$0xff]
        %v205 = vld [vmem:[%s1 + $0x48] sm:$0xff]
        %v206 = vld [vmem:[%s1 + $0x50] sm:$0xff]
        %v207 = vld [vmem:[%s1 + $0x58] sm:$0xff]
        %v208 = vld [vmem:[%s1 + $0x60] sm:$0xff]
        %v209 = vld [vmem:[%s1 + $0x68] sm:$0xff]
        %v210 = vld [vmem:[%s1 + $0x70] sm:$0xff]
        %v211 = vld [vmem:[%s1 + $0x78] sm:$0xff]
        %v212 = vld [vmem:[%s195] sm:$0xff]
        %v213 = vld [vmem:[%s195 + $0x8] sm:$0xff]
        %vm214 = vcmask 130048
        %v216 = vsel %vm214, %v196, 0
        %v219 = vsel %vm214, %v197, 0
        %v222 = vsel %vm214, %v198, 0
        %v225 = vsel %vm214, %v199, 0
        %v228 = vsel %vm214, %v200, 0
        %v231 = vsel %vm214, %v201, 0
        %v234 = vsel %vm214, %v202, 0
        %v237 = vsel %vm214, %v203, 0
        %v240 = vsel %vm214, %v204, 0
        %v243 = vsel %vm214, %v205, 0
        %v246 = vsel %vm214, %v206, 0
        %v249 = vsel %vm214, %v207, 0
        %v252 = vsel %vm214, %v208, 0
        %v255 = vsel %vm214, %v209, 0
        %v258 = vsel %vm214, %v210, 0
        %v261 = vsel %vm214, %v211, 0
        %263 = vmatprep.subr.mxu0 0.0
        %264 = vmatpush1.msra.mxu0 0.0
        %265 = vmatprep.subr.mxu0 0.0
        %266 = vmatpush1.msra.mxu0 0.0
        %267 = vmatprep.subr.mxu0 0.0
        %268 = vmatpush1.msra.mxu0 0.0
        %269 = vmatprep.subr.mxu0 0.0
        %270 = vmatpush1.msra.mxu0 0.0
        %271 = vmatprep.subr.mxu0 0.0
        %272 = vmatpush1.msra.mxu0 0.0
        %273 = vmatprep.subr.mxu0 0.0
        %274 = vmatpush1.msra.mxu0 0.0
        %275 = vmatprep.subr.mxu0 0.0
        %276 = vmatpush1.msra.mxu0 0.0
        %277 = vmatprep.subr.mxu0 0.0
        %278 = vmatpush1.msra.mxu0 0.0
        %279 = vmatprep.subr.mxu0 0.0
        %280 = vmatpush1.msra.mxu0 0.0
        %281 = vmatprep.subr.mxu0 0.0
        %282 = vmatpush1.msra.mxu0 0.0
        %283 = vmatprep.subr.mxu0 0.0
        %284 = vmatpush1.msra.mxu0 0.0
        %285 = vmatprep.subr.mxu0 0.0
        %286 = vmatpush1.msra.mxu0 0.0
        %287 = vmatprep.subr.mxu0 0.0
        %288 = vmatpush1.msra.mxu0 0.0
        %289 = vmatprep.subr.mxu0 0.0
        %290 = vmatpush1.msra.mxu0 0.0
        %291 = vmatprep.subr.mxu0 0.0
        %292 = vmatpush1.msra.mxu0 %v213
        %293 = vmatprep.subr.mxu0 0.0
        %294 = vmatpush1.msra.mxu0 %v212
        %295 = vmatprep.subr.mxu0 0.0
        %296 = vmatpush2.msra.mxu0 0.0
        %297 = vmatprep.subr.mxu0 0.0
        %298 = vmatpush2.msra.mxu0 0.0
        %299 = vmatprep.subr.mxu0 0.0
        %300 = vmatpush2.msra.mxu0 0.0
        %301 = vmatprep.subr.mxu0 0.0
        %302 = vmatpush2.msra.mxu0 0.0
        %303 = vmatprep.subr.mxu0 0.0
        %304 = vmatpush2.msra.mxu0 0.0
        %305 = vmatprep.subr.mxu0 0.0
        %306 = vmatpush2.msra.mxu0 0.0
        %307 = vmatprep.subr.mxu0 0.0
        %308 = vmatpush2.msra.mxu0 0.0
        %309 = vmatprep.subr.mxu0 0.0
        %310 = vmatpush2.msra.mxu0 0.0
        %311 = vmatprep.subr.mxu0 0.0
        %312 = vmatpush2.msra.mxu0 0.0
        %313 = vmatprep.subr.mxu0 0.0
        %314 = vmatpush2.msra.mxu0 0.0
        %315 = vmatprep.subr.mxu0 0.0
        %316 = vmatpush2.msra.mxu0 0.0
        %317 = vmatprep.subr.mxu0 0.0
        %318 = vmatpush2.msra.mxu0 0.0
        %319 = vmatprep.subr.mxu0 0.0
        %320 = vmatpush2.msra.mxu0 0.0
        %321 = vmatprep.subr.mxu0 0.0
        %322 = vmatpush2.msra.mxu0 0.0
        %323 = vmatprep.subr.mxu0 0.0
        %324 = vmatpush2.msra.mxu0 0.0
        %325 = vmatprep.subr.mxu0 0.0
        %326 = vmatpush2.msra.mxu0 0.0
        %327 = vmatprep.mubr.f32.mxu0 0.0
        %328 = vmatmul.mubr.f32.gmra.mxu0 %v216
        %v329 = vpop.f32.mrf.mxu0
        %v330 = vadd.f32 0.0, %v329
        %v331 = vpop.f32.mrf.mxu0
        %332 = vmatprep.mubr.f32.mxu0 0.0
        %333 = vmatmul.mubr.f32.gmra.mxu0 %v219
        %v334 = vpop.f32.mrf.mxu0
        %v335 = vadd.f32 0.0, %v334
        %v336 = vpop.f32.mrf.mxu0
        %337 = vmatprep.mubr.f32.mxu0 0.0
        %338 = vmatmul.mubr.f32.gmra.mxu0 %v222
        %v339 = vpop.f32.mrf.mxu0
        %v340 = vadd.f32 0.0, %v339
        %v341 = vpop.f32.mrf.mxu0
        %342 = vmatprep.mubr.f32.mxu0 0.0
        %343 = vmatmul.mubr.f32.gmra.mxu0 %v225
        %v344 = vpop.f32.mrf.mxu0
        %v345 = vadd.f32 0.0, %v344
        %v346 = vpop.f32.mrf.mxu0
        %347 = vmatprep.mubr.f32.mxu0 0.0
        %348 = vmatmul.mubr.f32.gmra.mxu0 %v228
        %v349 = vpop.f32.mrf.mxu0
        %v350 = vadd.f32 0.0, %v349
        %v351 = vpop.f32.mrf.mxu0
        %352 = vmatprep.mubr.f32.mxu0 0.0
        %353 = vmatmul.mubr.f32.gmra.mxu0 %v231
        %v354 = vpop.f32.mrf.mxu0
        %v355 = vadd.f32 0.0, %v354
        %v356 = vpop.f32.mrf.mxu0
        %357 = vmatprep.mubr.f32.mxu0 0.0
        %358 = vmatmul.mubr.f32.gmra.mxu0 %v234
        %v359 = vpop.f32.mrf.mxu0
        %v360 = vadd.f32 0.0, %v359
        %v361 = vpop.f32.mrf.mxu0
        %362 = vmatprep.mubr.f32.mxu0 0.0
        %363 = vmatmul.mubr.f32.gmra.mxu0 %v237
        %v364 = vpop.f32.mrf.mxu0
        %v365 = vadd.f32 0.0, %v364
        %v366 = vpop.f32.mrf.mxu0
        %367 = vmatprep.mubr.f32.mxu0 0.0
        %368 = vmatmul.mubr.f32.gmra.mxu0 %v240
        %v369 = vpop.f32.mrf.mxu0
        %v370 = vadd.f32 0.0, %v369
        %v371 = vpop.f32.mrf.mxu0
        %372 = vmatprep.mubr.f32.mxu0 0.0
        %373 = vmatmul.mubr.f32.gmra.mxu0 %v243
        %v374 = vpop.f32.mrf.mxu0
        %v375 = vadd.f32 0.0, %v374
        %v376 = vpop.f32.mrf.mxu0
        %377 = vmatprep.mubr.f32.mxu0 0.0
        %378 = vmatmul.mubr.f32.gmra.mxu0 %v246
        %v379 = vpop.f32.mrf.mxu0
        %v380 = vadd.f32 0.0, %v379
        %v381 = vpop.f32.mrf.mxu0
        %382 = vmatprep.mubr.f32.mxu0 0.0
        %383 = vmatmul.mubr.f32.gmra.mxu0 %v249
        %v384 = vpop.f32.mrf.mxu0
        %v385 = vadd.f32 0.0, %v384
        %v386 = vpop.f32.mrf.mxu0
        %387 = vmatprep.mubr.f32.mxu0 0.0
        %388 = vmatmul.mubr.f32.gmra.mxu0 %v252
        %v389 = vpop.f32.mrf.mxu0
        %v390 = vadd.f32 0.0, %v389
        %v391 = vpop.f32.mrf.mxu0
        %392 = vmatprep.mubr.f32.mxu0 0.0
        %393 = vmatmul.mubr.f32.gmra.mxu0 %v255
        %v394 = vpop.f32.mrf.mxu0
        %v395 = vadd.f32 0.0, %v394
        %v396 = vpop.f32.mrf.mxu0
        %397 = vmatprep.mubr.f32.mxu0 0.0
        %398 = vmatmul.mubr.f32.gmra.mxu0 %v258
        %v399 = vpop.f32.mrf.mxu0
        %v400 = vadd.f32 0.0, %v399
        %v401 = vpop.f32.mrf.mxu0
        %402 = vmatprep.mubr.f32.mxu0 0.0
        %403 = vmatmul.mubr.f32.gmra.mxu0 %v261
        %v404 = vpop.f32.mrf.mxu0
        %v405 = vadd.f32 0.0, %v404
        %v406 = vpop.f32.mrf.mxu0
        %407 = vdwg.mxu0
        %408 = vst.msk [vmem:[#allocation2] sm:$0xff] %vm214, %v330
        %410 = vrot.lane.b32.xlu0 %v335, 16
        %v411 = vpop.permute.xlu0 %410
        %vm413 = vcmask 261248
        %414 = vst.msk [vmem:[#allocation2] sm:$0xff] %vm413, %v411
        %416 = vrot.lane.b32.xlu0 %v340, 32
        %v417 = vpop.permute.xlu0 %416
        %vm419 = vcmask 392448
        %420 = vst.msk [vmem:[#allocation2] sm:$0xff] %vm419, %v417
        %422 = vrot.lane.b32.xlu0 %v345, 48
        %v423 = vpop.permute.xlu0 %422
        %vm425 = vcmask 523648
        %426 = vst.msk [vmem:[#allocation2] sm:$0xff] %vm425, %v423
        %428 = vrot.lane.b32.xlu0 %v350, 64
        %v429 = vpop.permute.xlu0 %428
        %vm431 = vcmask 654848
        %432 = vst.msk [vmem:[#allocation2] sm:$0xff] %vm431, %v429
        %434 = vrot.lane.b32.xlu0 %v355, 80
        %v435 = vpop.permute.xlu0 %434
        %vm437 = vcmask 786048
        %438 = vst.msk [vmem:[#allocation2] sm:$0xff] %vm437, %v435
        %440 = vrot.lane.b32.xlu0 %v360, 96
        %v441 = vpop.permute.xlu0 %440
        %vm443 = vcmask 917248
        %444 = vst.msk [vmem:[#allocation2] sm:$0xff] %vm443, %v441
        %446 = vrot.lane.b32.xlu0 %v365, 112
        %v447 = vpop.permute.xlu0 %446
        %vm449 = vcmask 1048448
        %450 = vst.msk [vmem:[#allocation2] sm:$0xff] %vm449, %v447
        %451 = vst.msk [vmem:[#allocation2 + $0x8] sm:$0xff] %vm214, %v370
        %453 = vrot.lane.b32.xlu0 %v375, 16
        %v454 = vpop.permute.xlu0 %453
        %456 = vst.msk [vmem:[#allocation2 + $0x8] sm:$0xff] %vm413, %v454
        %458 = vrot.lane.b32.xlu0 %v380, 32
        %v459 = vpop.permute.xlu0 %458
        %461 = vst.msk [vmem:[#allocation2 + $0x8] sm:$0xff] %vm419, %v459
        %463 = vrot.lane.b32.xlu0 %v385, 48
        %v464 = vpop.permute.xlu0 %463
        %466 = vst.msk [vmem:[#allocation2 + $0x8] sm:$0xff] %vm425, %v464
        %468 = vrot.lane.b32.xlu0 %v390, 64
        %v469 = vpop.permute.xlu0 %468
        %471 = vst.msk [vmem:[#allocation2 + $0x8] sm:$0xff] %vm431, %v469
        %473 = vrot.lane.b32.xlu0 %v395, 80
        %v474 = vpop.permute.xlu0 %473
        %476 = vst.msk [vmem:[#allocation2 + $0x8] sm:$0xff] %vm437, %v474
        %478 = vrot.lane.b32.xlu0 %v400, 96
        %v479 = vpop.permute.xlu0 %478
        %481 = vst.msk [vmem:[#allocation2 + $0x8] sm:$0xff] %vm443, %v479
        %483 = vrot.lane.b32.xlu0 %v405, 112
        %v484 = vpop.permute.xlu0 %483
        %486 = vst.msk [vmem:[#allocation2 + $0x8] sm:$0xff] %vm449, %v484
        %v487 = vld [vmem:[#allocation2] sm:$0xff]
        %v488 = vld [vmem:[#allocation2 + $0x8] sm:$0xff]
        %v489 = vld [vmem:[%s2] sm:$0xff]
        %v490 = vld [vmem:[%s2 + $0x8] sm:$0xff]
        %v491 = vld [vmem:[%s2 + $0x10] sm:$0xff]
        %v492 = vld [vmem:[%s2 + $0x18] sm:$0xff]
        %v493 = vld [vmem:[%s2 + $0x20] sm:$0xff]
        %v494 = vld [vmem:[%s2 + $0x28] sm:$0xff]
        %v495 = vld [vmem:[%s2 + $0x30] sm:$0xff]
        %v496 = vld [vmem:[%s2 + $0x38] sm:$0xff]
        %v497 = vld [vmem:[%s2 + $0x40] sm:$0xff]
        %v498 = vld [vmem:[%s2 + $0x48] sm:$0xff]
        %v499 = vld [vmem:[%s2 + $0x50] sm:$0xff]
        %v500 = vld [vmem:[%s2 + $0x58] sm:$0xff]
        %v501 = vld [vmem:[%s2 + $0x60] sm:$0xff]
        %v502 = vld [vmem:[%s2 + $0x68] sm:$0xff]
        %v503 = vld [vmem:[%s2 + $0x70] sm:$0xff]
        %v504 = vld [vmem:[%s2 + $0x78] sm:$0xff]
        %v505 = vld [vmem:[%s2 + $0x80] sm:$0xff]
        %v506 = vld [vmem:[%s2 + $0x88] sm:$0xff]
        %v507 = vld [vmem:[%s2 + $0x90] sm:$0xff]
        %v508 = vld [vmem:[%s2 + $0x98] sm:$0xff]
        %v509 = vld [vmem:[%s2 + $0xa0] sm:$0xff]
        %v510 = vld [vmem:[%s2 + $0xa8] sm:$0xff]
        %v511 = vld [vmem:[%s2 + $0xb0] sm:$0xff]
        %v512 = vld [vmem:[%s2 + $0xb8] sm:$0xff]
        %v513 = vld [vmem:[%s2 + $0xc0] sm:$0xff]
        %v514 = vld [vmem:[%s2 + $0xc8] sm:$0xff]
        %v515 = vld [vmem:[%s2 + $0xd0] sm:$0xff]
        %v516 = vld [vmem:[%s2 + $0xd8] sm:$0xff]
        %v517 = vld [vmem:[%s2 + $0xe0] sm:$0xff]
        %v518 = vld [vmem:[%s2 + $0xe8] sm:$0xff]
        %v519 = vld [vmem:[%s2 + $0xf0] sm:$0xff]
        %v520 = vld [vmem:[%s2 + $0xf8] sm:$0xff]
        %v521 = vld [vmem:[%s3] sm:$0xff]
        %522 = vmatprep.subr.mxu0 0.0
        %523 = vmatpush1.msra.mxu0 %v504
        %524 = vmatprep.subr.mxu0 0.0
        %525 = vmatpush1.msra.mxu0 %v503
        %526 = vmatprep.subr.mxu0 0.0
        %527 = vmatpush1.msra.mxu0 %v502
        %528 = vmatprep.subr.mxu0 0.0
        %529 = vmatpush1.msra.mxu0 %v501
        %530 = vmatprep.subr.mxu0 0.0
        %531 = vmatpush1.msra.mxu0 %v500
        %532 = vmatprep.subr.mxu0 0.0
        %533 = vmatpush1.msra.mxu0 %v499
        %534 = vmatprep.subr.mxu0 0.0
        %535 = vmatpush1.msra.mxu0 %v498
        %536 = vmatprep.subr.mxu0 0.0
        %537 = vmatpush1.msra.mxu0 %v497
        %538 = vmatprep.subr.mxu0 0.0
        %539 = vmatpush1.msra.mxu0 %v496
        %540 = vmatprep.subr.mxu0 0.0
        %541 = vmatpush1.msra.mxu0 %v495
        %542 = vmatprep.subr.mxu0 0.0
        %543 = vmatpush1.msra.mxu0 %v494
        %544 = vmatprep.subr.mxu0 0.0
        %545 = vmatpush1.msra.mxu0 %v493
        %546 = vmatprep.subr.mxu0 0.0
        %547 = vmatpush1.msra.mxu0 %v492
        %548 = vmatprep.subr.mxu0 0.0
        %549 = vmatpush1.msra.mxu0 %v491
        %550 = vmatprep.subr.mxu0 0.0
        %551 = vmatpush1.msra.mxu0 %v490
        %552 = vmatprep.subr.mxu0 0.0
        %553 = vmatpush1.msra.mxu0 %v489
        %554 = vmatprep.subr.mxu0 0.0
        %555 = vmatpush2.msra.mxu0 %v520
        %556 = vmatprep.subr.mxu0 0.0
        %557 = vmatpush2.msra.mxu0 %v519
        %558 = vmatprep.subr.mxu0 0.0
        %559 = vmatpush2.msra.mxu0 %v518
        %560 = vmatprep.subr.mxu0 0.0
        %561 = vmatpush2.msra.mxu0 %v517
        %562 = vmatprep.subr.mxu0 0.0
        %563 = vmatpush2.msra.mxu0 %v516
        %564 = vmatprep.subr.mxu0 0.0
        %565 = vmatpush2.msra.mxu0 %v515
        %566 = vmatprep.subr.mxu0 0.0
        %567 = vmatpush2.msra.mxu0 %v514
        %568 = vmatprep.subr.mxu0 0.0
        %569 = vmatpush2.msra.mxu0 %v513
        %570 = vmatprep.subr.mxu0 0.0
        %571 = vmatpush2.msra.mxu0 %v512
        %572 = vmatprep.subr.mxu0 0.0
        %573 = vmatpush2.msra.mxu0 %v511
        %574 = vmatprep.subr.mxu0 0.0
        %575 = vmatpush2.msra.mxu0 %v510
        %576 = vmatprep.subr.mxu0 0.0
        %577 = vmatpush2.msra.mxu0 %v509
        %578 = vmatprep.subr.mxu0 0.0
        %579 = vmatpush2.msra.mxu0 %v508
        %580 = vmatprep.subr.mxu0 0.0
        %581 = vmatpush2.msra.mxu0 %v507
        %582 = vmatprep.subr.mxu0 0.0
        %583 = vmatpush2.msra.mxu0 %v506
        %584 = vmatprep.subr.mxu0 0.0
        %585 = vmatpush2.msra.mxu0 %v505
        %586 = vmatprep.mubr.f32.mxu0 %v488
        %587 = vmatmul.mubr.f32.gmra.mxu0 %v487
        %v588 = vpop.f32.mrf.mxu0
        %v589 = vadd.f32 %v521, %v588
        %v590 = vpop.f32.mrf.mxu0
        %591 = vdwg.mxu0
        %592 = vst [vmem:[%s190] sm:$0xff] %v589
        %s593 = sand.u32 %s115, 1
        %s594 = scalar_lea.sflag [#allocation4], %s593
        %s595 = sand.u32 %s115, 1
        %s596 = smul.addr %s595, 8
        %s597 = scalar_lea.vmem [#allocation3], %s596
        // Predicated region
        $region37: #{forward.1} parent=35 // pred_check
          %p598 = pneg %p125
        $region38: #{forward.1} parent=35 // pred_check_branch
          %600 = sbr.rel (%p598) target = $region40
        $region39: #{forward.1} parent=35 // pred_region
          %s602 = ssub.s32 128, 128
          %603 = vsyncadd %s594, %s602
          %s604 = smul.addr %s18, 128
          %s605 = scalar_lea.hbm %s4, %s604
          %s607 = sshll.u32 %s597, 4
          %s608 = int_to_ptr.vmem [resolvable:$true] %s607
          %610 = dma.vmem_to_hbm [thread:$0]  %s608, 128, %s605, %s594
        $region40: #{forward.1} parent=35 // pred_fallthru
          _
      $region36: #{forward.1} parent=5 // pred_fallthru
        _
      %p611 = scmp.le.s32.totalorder 2, %s13
      // Predicated region
      $region41: #{forward.1} parent=5 // pred_check
        %p612 = pneg %p611
      $region42: #{forward.1} parent=5 // pred_check_branch
        %614 = sbr.rel (%p612) target = $region44
      $region43: #{forward.1} parent=5 // pred_region
        %s615 = ssub.s32 %s13, 2
        // Predicated region
        $region45: #{forward.1} parent=43 // pred_check
          %p616 = pneg %p131
        $region46: #{forward.1} parent=43 // pred_check_branch
          %618 = sbr.rel (%p616) target = $region48
        $region47: #{forward.1} parent=43 // pred_region
          %s619 = sand.u32 %s116, 1
          %s620 = scalar_lea.sflag [#allocation4], %s619
          %s621 = sand.u32 %s116, 1
          %s622 = smul.addr %s621, 8
          %s623 = scalar_lea.vmem [#allocation3], %s622
          %624 = dma.done %s620, 128
        $region48: #{forward.1} parent=43 // pred_fallthru
          _
      $region44: #{forward.1} parent=5 // pred_fallthru
        _
    $region6: #{forward.1} parent=1 // loop_footer
      %s17 = sadd.s32 1, %s13
    $region7: #{forward.1} parent=1 // loop_footer_branch
      %12 = sbr.rel target = $region3
    $region8: #{forward.1} parent=1 // loop_exit
      _
    %625 = vsyncpa [#allocation4], 1
    %s626 = scalar_lea.sflag [#allocation4], 1
    %627 = vsyncpa %s626, 1

</llo_original>
